<compile_context>
chip_gen: v7x
topology: tpu7x:2x2x1
jax: 0.10.0
libtpu: 0.0.40
codegen_flags: <defaults>
</compile_context>

<pallas_src>
import functools

import jax
import jax.numpy as jnp
from jax.experimental import pallas as pl
from jax.experimental.pallas import tpu as pltpu


def _round_up(x, m):
    return (x + m - 1) // m * m


def _cdiv(a, b):
    return (a + b - 1) // b


def encoder_mlp_kernel(
    x_ref,      # (TB, D_pad)   f32 streamed input tile
    w1_ref,     # (D_pad, H_pad) bf16 fc1 weight (transposed, zero-padded)
    w2_ref,     # (H_pad, H_pad) bf16 fc2 weight
    w3_ref,     # (H_pad, O_pad) bf16 fc3 weight
    vec_ref,    # (8, W) f32 packed [b1, b2, b3, gamma, beta, 0, 0, 0]
    o_ref,      # (TB, O_pad)   f32 output tile
    *,
    hidden_true: int,
):
    h_pad = w1_ref.shape[1]
    o_pad = w3_ref.shape[1]

    vec = vec_ref[...]                      # tiny (8, W) load
    b1 = vec[0:1, :h_pad]
    b2 = vec[1:2, :h_pad]
    b3 = vec[2:3, :o_pad]
    gamma = vec[3:4, :h_pad]
    beta = vec[4:5, :h_pad]

    # fc1 + ReLU (bf16 MXU path, f32 accumulation).  Padded hidden lanes have
    # zero weight/bias -> stay exactly 0.
    xb = x_ref[...].astype(jnp.bfloat16)
    h = jnp.dot(xb, w1_ref[...], preferred_element_type=jnp.float32) + b1
    h = jnp.maximum(h, 0.0)

    # fc2 (padded lanes remain exactly 0).
    h = jnp.dot(h.astype(jnp.bfloat16), w2_ref[...],
                preferred_element_type=jnp.float32) + b2

    # LayerNorm over the TRUE hidden width, f32 math.  Padded lanes hold exact
    # zeros, so the lane sums equal the true-width sums; no mask needed.
    inv_n = 1.0 / float(hidden_true)
    mean = jnp.sum(h, axis=-1, keepdims=True) * inv_n
    var = jnp.sum(h * h, axis=-1, keepdims=True) * inv_n - mean * mean
    var = jnp.maximum(var, 0.0)             # guard f32 cancellation
    h = (h - mean) * jax.lax.rsqrt(var + 1e-5)
    h = h * gamma + beta                    # padded gamma/beta are 0 -> lanes stay 0

    # ReLU
    h = jnp.maximum(h, 0.0)

    # fc3 + Sigmoid (padded output lanes produce sigmoid(0); sliced off outside).
    out = jnp.dot(h.astype(jnp.bfloat16), w3_ref[...],
                  preferred_element_type=jnp.float32) + b3
    o_ref[...] = jax.nn.sigmoid(out)


def prepare_params(params):
    """One-time padding/packing/casting of parameters (hoisted out of forward)."""
    D, hidden = params["w1"].shape
    out_dim = params["w3"].shape[1]
    D_pad = _round_up(D, 128)
    H_pad = _round_up(hidden, 128)
    O_pad = _round_up(out_dim, 128)
    W = max(H_pad, O_pad)

    def pad2(a, rows, cols):
        return jnp.pad(a, ((0, rows - a.shape[0]), (0, cols - a.shape[1])))

    w1 = pad2(params["w1"], D_pad, H_pad).astype(jnp.bfloat16)
    w2 = pad2(params["w2"], H_pad, H_pad).astype(jnp.bfloat16)
    w3 = pad2(params["w3"], H_pad, O_pad).astype(jnp.bfloat16)

    vec = jnp.zeros((8, W), jnp.float32)
    vec = vec.at[0, :hidden].set(params["b1"].reshape(-1))
    vec = vec.at[1, :hidden].set(params["b2"].reshape(-1))
    vec = vec.at[2, :out_dim].set(params["b3"].reshape(-1))
    vec = vec.at[3, :hidden].set(params["gamma"].reshape(-1))
    vec = vec.at[4, :hidden].set(params["beta"].reshape(-1))

    return {
        "w1": w1, "w2": w2, "w3": w3, "vec": vec,
        "input_dim": D, "hidden": hidden, "out_dim": out_dim,
    }


def encoder_mlp(x_nchw, prepared, *, block_b=512):
    """x_nchw: [B, C, H, W] float32.  prepared: output of prepare_params()."""
    B = x_nchw.shape[0]
    x = x_nchw.reshape(B, -1).astype(jnp.float32)   # matches ins.view(B, -1)
    D = x.shape[1]
    assert D == prepared["input_dim"]

    hidden = prepared["hidden"]
    out_dim = prepared["out_dim"]
    D_pad, H_pad = prepared["w1"].shape
    O_pad = prepared["w3"].shape[1]
    W = prepared["vec"].shape[1]

    # Pad features only if the flattened dim is not lane-aligned (not needed here).
    if D != D_pad:
        x = jnp.pad(x, ((0, 0), (0, D_pad - D)))

    # Balanced batch tiles; ensure >= 2 grid steps when B is large enough so
    # both v7x TensorCores get a share of the "parallel" batch axis.
    num_tiles = max(_cdiv(B, block_b), 1)
    if num_tiles == 1 and B >= 16:
        num_tiles = 2
    TB = _round_up(_cdiv(B, num_tiles), 8)
    grid = (_cdiv(B, TB),)

    # Explicit VMEM budget (double-buffered x/out tiles + resident bf16 weights
    # + packed vectors + headroom for in-kernel temporaries), clamped to a
    # range that is safe on every generation (v5e default is only 16 MiB).
    w_bytes = (D_pad * H_pad + H_pad * H_pad + H_pad * O_pad) * 2  # bf16
    need = (TB * D_pad * 4 * 2
            + TB * O_pad * 4 * 2
            + w_bytes * 2
            + 8 * W * 4 * 2
            + TB * max(D_pad, H_pad) * 4 * 4)
    vmem_limit = int(min(max(2 * need, 32 * 1024 * 1024), 64 * 1024 * 1024))

    flops = 2 * B * (D * hidden + hidden * hidden + hidden * out_dim)
    bytes_accessed = B * D * 4 + B * out_dim * 4 + w_bytes + 8 * W * 4
    cost = pl.CostEstimate(flops=flops,
                           transcendentals=B * (out_dim + 1),
                           bytes_accessed=bytes_accessed)

    kernel = functools.partial(encoder_mlp_kernel, hidden_true=hidden)

    out = pl.pallas_call(
        kernel,
        out_shape=jax.ShapeDtypeStruct((B, O_pad), jnp.float32),
        grid=grid,
        in_specs=[
            # Streamed activation tile (partial last tile masked automatically).
            pl.BlockSpec((TB, D_pad), lambda i: (i, 0)),
            # VMEM-resident weights / packed vectors (constant index_map).
            pl.BlockSpec((D_pad, H_pad), lambda i: (0, 0)),
            pl.BlockSpec((H_pad, H_pad), lambda i: (0, 0)),
            pl.BlockSpec((H_pad, O_pad), lambda i: (0, 0)),
            pl.BlockSpec((8, W), lambda i: (0, 0)),
        ],
        out_specs=pl.BlockSpec((TB, O_pad), lambda i: (i, 0)),
        compiler_params=pltpu.CompilerParams(
            dimension_semantics=("parallel",),
            vmem_limit_bytes=vmem_limit),
        cost_estimate=cost,
    )(x, prepared["w1"], prepared["w2"], prepared["w3"], prepared["vec"])

    return out if O_pad == out_dim else out[:, :out_dim]


def init_params(key, input_dim, hidden_dim, output_dim):
    """Deterministic synthetic parameters (PyTorch-Linear-like uniform init).

    Weights are stored already transposed to (in, out)."""
    ks = jax.random.split(key, 6)

    def linear(kw, kb, fan_in, fan_out):
        bound = 1.0 / jnp.sqrt(fan_in)
        w = jax.random.uniform(kw, (fan_in, fan_out), jnp.float32, -bound, bound)
        b = jax.random.uniform(kb, (1, fan_out), jnp.float32, -bound, bound)
        return w, b

    w1, b1 = linear(ks[0], ks[1], input_dim, hidden_dim)
    w2, b2 = linear(ks[2], ks[3], hidden_dim, hidden_dim)
    w3, b3 = linear(ks[4], ks[5], hidden_dim, output_dim)
    gamma = jnp.ones((1, hidden_dim), jnp.float32)
    beta = jnp.zeros((1, hidden_dim), jnp.float32)
    return {
        "w1": w1, "b1": b1, "w2": w2, "b2": b2, "w3": w3, "b3": b3,
        "gamma": gamma, "beta": beta,
    }


def encoder_mlp_ref(x_nchw, params):
    """Pure-JAX f32 reference matching the PyTorch forward."""
    B = x_nchw.shape[0]
    h = x_nchw.reshape(B, -1)
    h = jnp.maximum(h @ params["w1"] + params["b1"], 0.0)
    h = h @ params["w2"] + params["b2"]
    mean = jnp.mean(h, axis=-1, keepdims=True)
    var = jnp.mean(jnp.square(h - mean), axis=-1, keepdims=True)
    h = (h - mean) / jnp.sqrt(var + 1e-5) * params["gamma"] + params["beta"]
    h = jnp.maximum(h, 0.0)
    return jax.nn.sigmoid(h @ params["w3"] + params["b3"])


if __name__ == "__main__":
    # Small shapes consistent with the forward: NCHW input flattened to [B, D]
    B, C, H, W = 2, 4, 16, 16
    input_dim = C * H * W      # 1024
    hidden_dim = 32
    output_dim = 16

    key = jax.random.PRNGKey(0)
    k_x, k_p = jax.random.split(key)
    x = jax.random.normal(k_x, (B, C, H, W), jnp.float32)
    params = init_params(k_p, input_dim, hidden_dim, output_dim)
    prepared = prepare_params(params)   # one-time pad/pack/cast

    out = encoder_mlp(x, prepared)
    out = jax.block_until_ready(out)

    ref = encoder_mlp_ref(x, params)
    assert out.shape == (B, output_dim)
    # bf16 matmul operands with f32 accumulation vs. full-f32 reference:
    # tolerance relaxed accordingly.
    err = float(jnp.max(jnp.abs(out - ref)))
    assert err < 2e-2, f"max abs err {err}"

    print("KERNEL_OK")
</pallas_src>

<mosaic_0001>
module attributes {stable_mosaic.version = 11 : i64} {
  func.func @encoder_mlp_kernel(%arg0: i32, %arg1: memref<8x1024xf32, #tpu.memory_space<vmem>>, %arg2: memref<1024x128xbf16, #tpu.memory_space<vmem>>, %arg3: memref<128x128xbf16, #tpu.memory_space<vmem>>, %arg4: memref<128x128xbf16, #tpu.memory_space<vmem>>, %arg5: memref<8x128xf32, #tpu.memory_space<vmem>>, %arg6: memref<8x128xf32, #tpu.memory_space<vmem>>) attributes {dimension_semantics = [#tpu.dimension_semantics<parallel>], iteration_bounds = array<i64: 1>, scalar_prefetch = 0 : i64, scratch_operands = 0 : i64, tpu.core_type = #tpu.core_type<tc>, window_params = [{transform_indices = @transform_0, window_bounds = array<i64: 8, 1024>}, {pipeline_mode = #tpu.pipeline_mode<synchronous>, transform_indices = @transform_1, window_bounds = array<i64: 1024, 128>}, {pipeline_mode = #tpu.pipeline_mode<synchronous>, transform_indices = @transform_2, window_bounds = array<i64: 128, 128>}, {pipeline_mode = #tpu.pipeline_mode<synchronous>, transform_indices = @transform_3, window_bounds = array<i64: 128, 128>}, {pipeline_mode = #tpu.pipeline_mode<synchronous>, transform_indices = @transform_4, window_bounds = array<i64: 8, 128>}, {transform_indices = @transform_5, window_bounds = array<i64: 8, 128>}]} {
    %c0 = arith.constant 0 : index
    %c0_0 = arith.constant 0 : index
    %0 = vector.load %arg5[%c0, %c0_0] : memref<8x128xf32, #tpu.memory_space<vmem>>, vector<8x128xf32>
    %1 = vector.extract_strided_slice %0 {offsets = [0, 0], sizes = [1, 128], strides = [1, 1]} : vector<8x128xf32> to vector<1x128xf32>
    %2 = vector.extract_strided_slice %0 {offsets = [1, 0], sizes = [1, 128], strides = [1, 1]} : vector<8x128xf32> to vector<1x128xf32>
    %3 = vector.extract_strided_slice %0 {offsets = [2, 0], sizes = [1, 128], strides = [1, 1]} : vector<8x128xf32> to vector<1x128xf32>
    %4 = vector.extract_strided_slice %0 {offsets = [3, 0], sizes = [1, 128], strides = [1, 1]} : vector<8x128xf32> to vector<1x128xf32>
    %5 = vector.extract_strided_slice %0 {offsets = [4, 0], sizes = [1, 128], strides = [1, 1]} : vector<8x128xf32> to vector<1x128xf32>
    %c0_1 = arith.constant 0 : index
    %c0_2 = arith.constant 0 : index
    %6 = vector.load %arg1[%c0_1, %c0_2] : memref<8x1024xf32, #tpu.memory_space<vmem>>, vector<8x1024xf32>
    %7 = arith.truncf %6 : vector<8x1024xf32> to vector<8x1024xbf16>
    %c0_3 = arith.constant 0 : index
    %c0_4 = arith.constant 0 : index
    %8 = vector.load %arg2[%c0_3, %c0_4] : memref<1024x128xbf16, #tpu.memory_space<vmem>>, vector<1024x128xbf16>
    %cst = arith.constant dense<0.000000e+00> : vector<8x128xf32>
    %9 = tpu.matmul %7, %8, %cst {dimension_numbers = #tpu.dot_dimension_numbers<[1], [0], [0], [1], [0, 0, 1, 1], [], []>} : vector<8x1024xbf16>, vector<1024x128xbf16>, vector<8x128xf32> -> vector<8x128xf32>
    %10 = vector.broadcast %1 : vector<1x128xf32> to vector<8x128xf32>
    %11 = arith.addf %9, %10 : vector<8x128xf32>
    %cst_5 = arith.constant 0.000000e+00 : f32
    %12 = vector.broadcast %cst_5 : f32 to vector<8x128xf32>
    %13 = arith.maximumf %11, %12 : vector<8x128xf32>
    %14 = arith.truncf %13 : vector<8x128xf32> to vector<8x128xbf16>
    %c0_6 = arith.constant 0 : index
    %c0_7 = arith.constant 0 : index
    %15 = vector.load %arg3[%c0_6, %c0_7] : memref<128x128xbf16, #tpu.memory_space<vmem>>, vector<128x128xbf16>
    %cst_8 = arith.constant dense<0.000000e+00> : vector<8x128xf32>
    %16 = tpu.matmul %14, %15, %cst_8 {dimension_numbers = #tpu.dot_dimension_numbers<[1], [0], [0], [1], [0, 0, 1, 1], [], []>} : vector<8x128xbf16>, vector<128x128xbf16>, vector<8x128xf32> -> vector<8x128xf32>
    %17 = vector.broadcast %2 : vector<1x128xf32> to vector<8x128xf32>
    %18 = arith.addf %16, %17 : vector<8x128xf32>
    %cst_9 = arith.constant dense<0.000000e+00> : vector<8xf32>
    %19 = vector.multi_reduction <add>, %18, %cst_9 [1] : vector<8x128xf32> to vector<8xf32>
    %20 = vector.shape_cast %19 : vector<8xf32> to vector<8x1xf32>
    %cst_10 = arith.constant 3.125000e-02 : f32
    %21 = vector.broadcast %cst_10 : f32 to vector<8x1xf32>
    %22 = arith.mulf %20, %21 : vector<8x1xf32>
    %23 = arith.mulf %18, %18 : vector<8x128xf32>
    %cst_11 = arith.constant dense<0.000000e+00> : vector<8xf32>
    %24 = vector.multi_reduction <add>, %23, %cst_11 [1] : vector<8x128xf32> to vector<8xf32>
    %25 = vector.shape_cast %24 : vector<8xf32> to vector<8x1xf32>
    %cst_12 = arith.constant 3.125000e-02 : f32
    %26 = vector.broadcast %cst_12 : f32 to vector<8x1xf32>
    %27 = arith.mulf %25, %26 : vector<8x1xf32>
    %28 = arith.mulf %22, %22 : vector<8x1xf32>
    %29 = arith.subf %27, %28 : vector<8x1xf32>
    %cst_13 = arith.constant 0.000000e+00 : f32
    %30 = vector.broadcast %cst_13 : f32 to vector<8x1xf32>
    %31 = arith.maximumf %29, %30 : vector<8x1xf32>
    %32 = vector.broadcast %22 : vector<8x1xf32> to vector<8x128xf32>
    %33 = arith.subf %18, %32 : vector<8x128xf32>
    %cst_14 = arith.constant 9.99999974E-6 : f32
    %34 = vector.broadcast %cst_14 : f32 to vector<8x1xf32>
    %35 = arith.addf %31, %34 : vector<8x1xf32>
    %36 = math.rsqrt %35 : vector<8x1xf32>
    %37 = vector.broadcast %36 : vector<8x1xf32> to vector<8x128xf32>
    %38 = arith.mulf %33, %37 : vector<8x128xf32>
    %39 = vector.broadcast %4 : vector<1x128xf32> to vector<8x128xf32>
    %40 = arith.mulf %38, %39 : vector<8x128xf32>
    %41 = vector.broadcast %5 : vector<1x128xf32> to vector<8x128xf32>
    %42 = arith.addf %40, %41 : vector<8x128xf32>
    %cst_15 = arith.constant 0.000000e+00 : f32
    %43 = vector.broadcast %cst_15 : f32 to vector<8x128xf32>
    %44 = arith.maximumf %42, %43 : vector<8x128xf32>
    %45 = arith.truncf %44 : vector<8x128xf32> to vector<8x128xbf16>
    %c0_16 = arith.constant 0 : index
    %c0_17 = arith.constant 0 : index
    %46 = vector.load %arg4[%c0_16, %c0_17] : memref<128x128xbf16, #tpu.memory_space<vmem>>, vector<128x128xbf16>
    %cst_18 = arith.constant dense<0.000000e+00> : vector<8x128xf32>
    %47 = tpu.matmul %45, %46, %cst_18 {dimension_numbers = #tpu.dot_dimension_numbers<[1], [0], [0], [1], [0, 0, 1, 1], [], []>} : vector<8x128xbf16>, vector<128x128xbf16>, vector<8x128xf32> -> vector<8x128xf32>
    %48 = vector.broadcast %3 : vector<1x128xf32> to vector<8x128xf32>
    %49 = arith.addf %47, %48 : vector<8x128xf32>
    %50 = arith.negf %49 : vector<8x128xf32>
    %51 = math.exp %50 : vector<8x128xf32>
    %cst_19 = arith.constant 1.000000e+00 : f32
    %52 = vector.broadcast %cst_19 : f32 to vector<8x128xf32>
    %53 = arith.addf %52, %51 : vector<8x128xf32>
    %54 = arith.divf %52, %53 : vector<8x128xf32>
    %c0_20 = arith.constant 0 : index
    %c0_21 = arith.constant 0 : index
    %55 = vector.load %arg6[%c0_20, %c0_21] : memref<8x128xf32, #tpu.memory_space<vmem>>, vector<8x128xf32>
    tpu.vector_store %arg6[%c0_20, %c0_21], %54 {strides = array<i32>} : memref<8x128xf32, #tpu.memory_space<vmem>>, vector<8x128xf32>,
    return
  }
  func.func @transform_0(%arg0: i32) -> (i32, i32) {
    %c0_i32 = arith.constant 0 : i32
    %c0_i32_0 = arith.constant 0 : i32
    return %arg0, %c0_i32 : i32, i32
  }
  func.func @transform_1(%arg0: i32) -> (i32, i32) {
    %c0_i32 = arith.constant 0 : i32
    %c0_i32_0 = arith.constant 0 : i32
    %c0_i32_1 = arith.constant 0 : i32
    return %c0_i32, %c0_i32_0 : i32, i32
  }
  func.func @transform_2(%arg0: i32) -> (i32, i32) {
    %c0_i32 = arith.constant 0 : i32
    %c0_i32_0 = arith.constant 0 : i32
    %c0_i32_1 = arith.constant 0 : i32
    return %c0_i32, %c0_i32_0 : i32, i32
  }
  func.func @transform_3(%arg0: i32) -> (i32, i32) {
    %c0_i32 = arith.constant 0 : i32
    %c0_i32_0 = arith.constant 0 : i32
    %c0_i32_1 = arith.constant 0 : i32
    return %c0_i32, %c0_i32_0 : i32, i32
  }
  func.func @transform_4(%arg0: i32) -> (i32, i32) {
    %c0_i32 = arith.constant 0 : i32
    %c0_i32_0 = arith.constant 0 : i32
    %c0_i32_1 = arith.constant 0 : i32
    return %c0_i32, %c0_i32_0 : i32, i32
  }
  func.func @transform_5(%arg0: i32) -> (i32, i32) {
    %c0_i32 = arith.constant 0 : i32
    %c0_i32_0 = arith.constant 0 : i32
    return %arg0, %c0_i32 : i32, i32
  }
}

</mosaic_0001>

<llo_original>
// kernel: tpu_custom_call.1
$region0: #{tpu_custom_call.1}
  #allocation0 [shape = 'u32[]', space=smem, size = 0x4, offset = 0x4, fixed_abs, tag = 'smem constant byte address 0x4 - core index']
  #allocation1 [shape = 'u32[144,128]{1,0:T(1,128)}', space=vmem, size = 0x12000, scoped, tag = 'internal scratch']
  %s0 = inlined_call_operand.hbm [shape: f32[2,1024], index: 0, kind: input, shape index: {}]
  %s1 = inlined_call_operand.hbm [shape: bf16[1024,128], index: 1, kind: input, shape index: {}]
  %s2 = inlined_call_operand.hbm [shape: bf16[128,128], index: 2, kind: input, shape index: {}]
  %s3 = inlined_call_operand.hbm [shape: bf16[128,128], index: 3, kind: input, shape index: {}]
  %s4 = inlined_call_operand.vmem [shape: f32[8,128], index: 4, kind: input, shape index: {}]
  %s5 = inlined_call_operand.hbm [shape: f32[2,128], index: 5, kind: output, shape index: {}]
  %s6 = sld [smem:[#allocation0]]
  $region46: #{tpu_custom_call.1} parent=0
    _
  %s8 = ssub.s32 1, %s6
  %s9 = scalar_select 0, %s8, %s6
  $region1: #{tpu_custom_call.1} parent=0
    #allocation2 [shape = 'u8[32768]{0}', space=vmem, size = 0x8000, scoped, tag = 'input window, operand 0, single buffered']
    #allocation3 [shape = 's32[1]{0}', space=sflag, size = 0x4, scoped, tag = 'scoped memory for tpu_custom_call.1']
    #allocation4 [shape = 's32[1]{0}', space=sflag, size = 0x4, scoped, tag = 'scoped memory for tpu_custom_call.1']
    #allocation5 [shape = 'u8[262144]{0}', space=vmem, size = 0x40000, scoped, tag = 'input window, operand 1, single buffered']
    #allocation6 [shape = 's32[1]{0}', space=sflag, size = 0x4, scoped, tag = 'scoped memory for tpu_custom_call.1']
    #allocation7 [shape = 'u8[32768]{0}', space=vmem, size = 0x8000, scoped, tag = 'input window, operand 2, single buffered']
    #allocation8 [shape = 'u8[32768]{0}', space=vmem, size = 0x8000, scoped, tag = 'input window, operand 3, single buffered']
    #allocation9 [shape = 's32[1]{0}', space=sflag, size = 0x4, scoped, tag = 'scoped memory for tpu_custom_call.1']
    #allocation10 [shape = 'u8[4096]{0}', space=vmem, size = 0x1000, scoped, tag = 'output window, operand 0, single buffered']
    %10 = vsyncpa [#allocation3], 0
    %11 = vsyncpa [#allocation6], 0
    %12 = vsyncpa [#allocation9], 0
    %13 = vsyncpa [#allocation4], 0
    // Predicated region
    $region2: #{tpu_custom_call.1} parent=1 // pred_check
      _
    $region3: #{tpu_custom_call.1} parent=1 // pred_check_branch
      %15 = sbr.rel (0) target = $region5
    $region4: #{tpu_custom_call.1} parent=1 // pred_region
      %s17 = ssub.s32 1024, 256
      %18 = vsyncadd [#allocation3], %s17
      %s19 = sshll.u32 [#allocation2], 4
      %s20 = int_to_ptr.vmem [resolvable:$true] %s19
      %25 = dma.hbm_to_vmem [thread:$0]  %s0, 256, %s20, [#allocation3], 256, 256, 16
    $region5: #{tpu_custom_call.1} parent=1 // pred_fallthru
      _
    // Predicated region
    $region6: #{tpu_custom_call.1} parent=1 // pred_check
      _
    $region7: #{tpu_custom_call.1} parent=1 // pred_check_branch
      %27 = sbr.rel (0) target = $region9
    $region8: #{tpu_custom_call.1} parent=1 // pred_region
      %s29 = ssub.s32 8192, 8192
      %30 = vsyncadd [#allocation6], %s29
      %s31 = sshll.u32 [#allocation5], 4
      %s32 = int_to_ptr.vmem [resolvable:$true] %s31
      %37 = dma.hbm_to_vmem [thread:$0]  %s1, 8192, %s32, [#allocation6], 64, 64, 4
    $region9: #{tpu_custom_call.1} parent=1 // pred_fallthru
      _
    // Predicated region
    $region10: #{tpu_custom_call.1} parent=1 // pred_check
      _
    $region11: #{tpu_custom_call.1} parent=1 // pred_check_branch
      %39 = sbr.rel (0) target = $region13
    $region12: #{tpu_custom_call.1} parent=1 // pred_region
      %s41 = ssub.s32 1024, 1024
      %42 = vsyncadd [#allocation6], %s41
      %s43 = sshll.u32 [#allocation7], 4
      %s44 = int_to_ptr.vmem [resolvable:$true] %s43
      %49 = dma.hbm_to_vmem [thread:$0]  %s2, 1024, %s44, [#allocation6], 64, 64, 4
    $region13: #{tpu_custom_call.1} parent=1 // pred_fallthru
      _
    // Predicated region
    $region14: #{tpu_custom_call.1} parent=1 // pred_check
      _
    $region15: #{tpu_custom_call.1} parent=1 // pred_check_branch
      %51 = sbr.rel (0) target = $region17
    $region16: #{tpu_custom_call.1} parent=1 // pred_region
      %s53 = ssub.s32 1024, 1024
      %54 = vsyncadd [#allocation9], %s53
      %s55 = sshll.u32 [#allocation8], 4
      %s56 = int_to_ptr.vmem [resolvable:$true] %s55
      %61 = dma.hbm_to_vmem [thread:$0]  %s3, 1024, %s56, [#allocation9], 64, 64, 4
    $region17: #{tpu_custom_call.1} parent=1 // pred_fallthru
      _
    // Predicated region
    $region18: #{tpu_custom_call.1} parent=1 // pred_check
      _
    $region19: #{tpu_custom_call.1} parent=1 // pred_check_branch
      %63 = sbr.rel (0) target = $region21
    $region20: #{tpu_custom_call.1} parent=1 // pred_region
      _
    $region21: #{tpu_custom_call.1} parent=1 // pred_fallthru
      _
    // Predicated region
    $region22: #{tpu_custom_call.1} parent=1 // pred_check
      _
    $region23: #{tpu_custom_call.1} parent=1 // pred_check_branch
      %65 = sbr.rel (0) target = $region25
    $region24: #{tpu_custom_call.1} parent=1 // pred_region
      %66 = dma.done [#allocation3], 1024
    $region25: #{tpu_custom_call.1} parent=1 // pred_fallthru
      _
    // Predicated region
    $region26: #{tpu_custom_call.1} parent=1 // pred_check
      _
    $region27: #{tpu_custom_call.1} parent=1 // pred_check_branch
      %68 = sbr.rel (0) target = $region29
    $region28: #{tpu_custom_call.1} parent=1 // pred_region
      %69 = dma.done [#allocation6], 8192
    $region29: #{tpu_custom_call.1} parent=1 // pred_fallthru
      _
    // Predicated region
    $region30: #{tpu_custom_call.1} parent=1 // pred_check
      _
    $region31: #{tpu_custom_call.1} parent=1 // pred_check_branch
      %71 = sbr.rel (0) target = $region33
    $region32: #{tpu_custom_call.1} parent=1 // pred_region
      %72 = dma.done [#allocation6], 1024
    $region33: #{tpu_custom_call.1} parent=1 // pred_fallthru
      _
    // Predicated region
    $region34: #{tpu_custom_call.1} parent=1 // pred_check
      _
    $region35: #{tpu_custom_call.1} parent=1 // pred_check_branch
      %74 = sbr.rel (0) target = $region37
    $region36: #{tpu_custom_call.1} parent=1 // pred_region
      %75 = dma.done [#allocation9], 1024
    $region37: #{tpu_custom_call.1} parent=1 // pred_fallthru
      _
    %v77 = vld [vmem:[%s4] sm:$0xff]
    %v78 = vld [vmem:[#allocation2] sm:$0xff]
    %v79 = vld [vmem:[#allocation2 + $0x8] sm:$0xff]
    %v80 = vld [vmem:[#allocation2 + $0x10] sm:$0xff]
    %v81 = vld [vmem:[#allocation2 + $0x18] sm:$0xff]
    %v82 = vld [vmem:[#allocation2 + $0x20] sm:$0xff]
    %v83 = vld [vmem:[#allocation2 + $0x28] sm:$0xff]
    %v84 = vld [vmem:[#allocation2 + $0x30] sm:$0xff]
    %v85 = vld [vmem:[#allocation2 + $0x38] sm:$0xff]
    %v94 = vcombine.low %v78, %v80
    %v95 = vcombine.high %v78, %v80
    %v96 = vcombine.low %v82, %v84
    %v97 = vcombine.high %v82, %v84
    %v99 = vunpack.c.l.s4 1983009808
    %v100 = vunpack.c.0.s8 %v99
    %v101 = vlaneseq
    %v102 = vshrl.u32 %v101, 7
    %v103 = vsub.s32 %v100, %v102
    %v104 = vrot.slane %v94, %v103
    %v106 = vunpack.c.l.s4 1983009808
    %v107 = vunpack.c.0.s8 %v106
    %v108 = vlaneseq
    %v109 = vshrl.u32 %v108, 7
    %v110 = vsub.s32 %v107, %v109
    %v111 = vrot.slane %v95, %v110
    %v113 = vunpack.c.l.s4 1983009808
    %v114 = vunpack.c.0.s8 %v113
    %v115 = vlaneseq
    %v116 = vshrl.u32 %v115, 7
    %v117 = vsub.s32 %v114, %v116
    %v118 = vrot.slane %v96, %v117
    %v120 = vunpack.c.l.s4 1983009808
    %v121 = vunpack.c.0.s8 %v120
    %v122 = vlaneseq
    %v123 = vshrl.u32 %v122, 7
    %v124 = vsub.s32 %v121, %v123
    %v125 = vrot.slane %v97, %v124
    %v126 = vcombine.low %v104, %v118
    %v127 = vcombine.high %v104, %v118
    %v128 = vcombine.low %v111, %v125
    %v129 = vcombine.high %v111, %v125
    %v130 = vcombine.low %v79, %v81
    %v131 = vcombine.high %v79, %v81
    %v132 = vcombine.low %v83, %v85
    %v133 = vcombine.high %v83, %v85
    %v135 = vunpack.c.l.s4 1983009808
    %v136 = vunpack.c.0.s8 %v135
    %v137 = vlaneseq
    %v138 = vshrl.u32 %v137, 7
    %v139 = vsub.s32 %v136, %v138
    %v140 = vrot.slane %v130, %v139
    %v142 = vunpack.c.l.s4 1983009808
    %v143 = vunpack.c.0.s8 %v142
    %v144 = vlaneseq
    %v145 = vshrl.u32 %v144, 7
    %v146 = vsub.s32 %v143, %v145
    %v147 = vrot.slane %v131, %v146
    %v149 = vunpack.c.l.s4 1983009808
    %v150 = vunpack.c.0.s8 %v149
    %v151 = vlaneseq
    %v152 = vshrl.u32 %v151, 7
    %v153 = vsub.s32 %v150, %v152
    %v154 = vrot.slane %v132, %v153
    %v156 = vunpack.c.l.s4 1983009808
    %v157 = vunpack.c.0.s8 %v156
    %v158 = vlaneseq
    %v159 = vshrl.u32 %v158, 7
    %v160 = vsub.s32 %v157, %v159
    %v161 = vrot.slane %v133, %v160
    %v162 = vcombine.low %v140, %v154
    %v163 = vcombine.high %v140, %v154
    %v164 = vcombine.low %v147, %v161
    %v165 = vcombine.high %v147, %v161
    %v174 = vpack.c.bf16 %v126, %v126
    %v175 = vpack.c.bf16 %v127, %v127
    %v176 = vpack.c.bf16 %v128, %v128
    %v177 = vpack.c.bf16 %v129, %v129
    %v178 = vpack.c.bf16 %v162, %v162
    %v179 = vpack.c.bf16 %v163, %v163
    %v180 = vpack.c.bf16 %v164, %v164
    %v181 = vpack.c.bf16 %v165, %v165
    %v182 = vld [vmem:[#allocation5] sm:$0xf]
    %v183 = vld [vmem:[#allocation5 + $0x4] sm:$0xf]
    %v184 = vld [vmem:[#allocation5 + $0x8] sm:$0xf]
    %v185 = vld [vmem:[#allocation5 + $0xc] sm:$0xf]
    %v186 = vld [vmem:[#allocation5 + $0x10] sm:$0xf]
    %v187 = vld [vmem:[#allocation5 + $0x14] sm:$0xf]
    %v188 = vld [vmem:[#allocation5 + $0x18] sm:$0xf]
    %v189 = vld [vmem:[#allocation5 + $0x1c] sm:$0xf]
    %v190 = vld [vmem:[#allocation5 + $0x20] sm:$0xf]
    %v191 = vld [vmem:[#allocation5 + $0x24] sm:$0xf]
    %v192 = vld [vmem:[#allocation5 + $0x28] sm:$0xf]
    %v193 = vld [vmem:[#allocation5 + $0x2c] sm:$0xf]
    %v194 = vld [vmem:[#allocation5 + $0x30] sm:$0xf]
    %v195 = vld [vmem:[#allocation5 + $0x34] sm:$0xf]
    %v196 = vld [vmem:[#allocation5 + $0x38] sm:$0xf]
    %v197 = vld [vmem:[#allocation5 + $0x3c] sm:$0xf]
    %v198 = vld [vmem:[#allocation5 + $0x40] sm:$0xf]
    %v199 = vld [vmem:[#allocation5 + $0x44] sm:$0xf]
    %v200 = vld [vmem:[#allocation5 + $0x48] sm:$0xf]
    %v201 = vld [vmem:[#allocation5 + $0x4c] sm:$0xf]
    %v202 = vld [vmem:[#allocation5 + $0x50] sm:$0xf]
    %v203 = vld [vmem:[#allocation5 + $0x54] sm:$0xf]
    %v204 = vld [vmem:[#allocation5 + $0x58] sm:$0xf]
    %v205 = vld [vmem:[#allocation5 + $0x5c] sm:$0xf]
    %v206 = vld [vmem:[#allocation5 + $0x60] sm:$0xf]
    %v207 = vld [vmem:[#allocation5 + $0x64] sm:$0xf]
    %v208 = vld [vmem:[#allocation5 + $0x68] sm:$0xf]
    %v209 = vld [vmem:[#allocation5 + $0x6c] sm:$0xf]
    %v210 = vld [vmem:[#allocation5 + $0x70] sm:$0xf]
    %v211 = vld [vmem:[#allocation5 + $0x74] sm:$0xf]
    %v212 = vld [vmem:[#allocation5 + $0x78] sm:$0xf]
    %v213 = vld [vmem:[#allocation5 + $0x7c] sm:$0xf]
    %v214 = vld [vmem:[#allocation5 + $0x80] sm:$0xf]
    %v215 = vld [vmem:[#allocation5 + $0x84] sm:$0xf]
    %v216 = vld [vmem:[#allocation5 + $0x88] sm:$0xf]
    %v217 = vld [vmem:[#allocation5 + $0x8c] sm:$0xf]
    %v218 = vld [vmem:[#allocation5 + $0x90] sm:$0xf]
    %v219 = vld [vmem:[#allocation5 + $0x94] sm:$0xf]
    %v220 = vld [vmem:[#allocation5 + $0x98] sm:$0xf]
    %v221 = vld [vmem:[#allocation5 + $0x9c] sm:$0xf]
    %v222 = vld [vmem:[#allocation5 + $0xa0] sm:$0xf]
    %v223 = vld [vmem:[#allocation5 + $0xa4] sm:$0xf]
    %v224 = vld [vmem:[#allocation5 + $0xa8] sm:$0xf]
    %v225 = vld [vmem:[#allocation5 + $0xac] sm:$0xf]
    %v226 = vld [vmem:[#allocation5 + $0xb0] sm:$0xf]
    %v227 = vld [vmem:[#allocation5 + $0xb4] sm:$0xf]
    %v228 = vld [vmem:[#allocation5 + $0xb8] sm:$0xf]
    %v229 = vld [vmem:[#allocation5 + $0xbc] sm:$0xf]
    %v230 = vld [vmem:[#allocation5 + $0xc0] sm:$0xf]
    %v231 = vld [vmem:[#allocation5 + $0xc4] sm:$0xf]
    %v232 = vld [vmem:[#allocation5 + $0xc8] sm:$0xf]
    %v233 = vld [vmem:[#allocation5 + $0xcc] sm:$0xf]
    %v234 = vld [vmem:[#allocation5 + $0xd0] sm:$0xf]
    %v235 = vld [vmem:[#allocation5 + $0xd4] sm:$0xf]
    %v236 = vld [vmem:[#allocation5 + $0xd8] sm:$0xf]
    %v237 = vld [vmem:[#allocation5 + $0xdc] sm:$0xf]
    %v238 = vld [vmem:[#allocation5 + $0xe0] sm:$0xf]
    %v239 = vld [vmem:[#allocation5 + $0xe4] sm:$0xf]
    %v240 = vld [vmem:[#allocation5 + $0xe8] sm:$0xf]
    %v241 = vld [vmem:[#allocation5 + $0xec] sm:$0xf]
    %v242 = vld [vmem:[#allocation5 + $0xf0] sm:$0xf]
    %v243 = vld [vmem:[#allocation5 + $0xf4] sm:$0xf]
    %v244 = vld [vmem:[#allocation5 + $0xf8] sm:$0xf]
    %v245 = vld [vmem:[#allocation5 + $0xfc] sm:$0xf]
    %v246 = vld [vmem:[#allocation5 + $0x100] sm:$0xf]
    %v247 = vld [vmem:[#allocation5 + $0x104] sm:$0xf]
    %v248 = vld [vmem:[#allocation5 + $0x108] sm:$0xf]
    %v249 = vld [vmem:[#allocation5 + $0x10c] sm:$0xf]
    %v250 = vld [vmem:[#allocation5 + $0x110] sm:$0xf]
    %v251 = vld [vmem:[#allocation5 + $0x114] sm:$0xf]
    %v252 = vld [vmem:[#allocation5 + $0x118] sm:$0xf]
    %v253 = vld [vmem:[#allocation5 + $0x11c] sm:$0xf]
    %v254 = vld [vmem:[#allocation5 + $0x120] sm:$0xf]
    %v255 = vld [vmem:[#allocation5 + $0x124] sm:$0xf]
    %v256 = vld [vmem:[#allocation5 + $0x128] sm:$0xf]
    %v257 = vld [vmem:[#allocation5 + $0x12c] sm:$0xf]
    %v258 = vld [vmem:[#allocation5 + $0x130] sm:$0xf]
    %v259 = vld [vmem:[#allocation5 + $0x134] sm:$0xf]
    %v260 = vld [vmem:[#allocation5 + $0x138] sm:$0xf]
    %v261 = vld [vmem:[#allocation5 + $0x13c] sm:$0xf]
    %v262 = vld [vmem:[#allocation5 + $0x140] sm:$0xf]
    %v263 = vld [vmem:[#allocation5 + $0x144] sm:$0xf]
    %v264 = vld [vmem:[#allocation5 + $0x148] sm:$0xf]
    %v265 = vld [vmem:[#allocation5 + $0x14c] sm:$0xf]
    %v266 = vld [vmem:[#allocation5 + $0x150] sm:$0xf]
    %v267 = vld [vmem:[#allocation5 + $0x154] sm:$0xf]
    %v268 = vld [vmem:[#allocation5 + $0x158] sm:$0xf]
    %v269 = vld [vmem:[#allocation5 + $0x15c] sm:$0xf]
    %v270 = vld [vmem:[#allocation5 + $0x160] sm:$0xf]
    %v271 = vld [vmem:[#allocation5 + $0x164] sm:$0xf]
    %v272 = vld [vmem:[#allocation5 + $0x168] sm:$0xf]
    %v273 = vld [vmem:[#allocation5 + $0x16c] sm:$0xf]
    %v274 = vld [vmem:[#allocation5 + $0x170] sm:$0xf]
    %v275 = vld [vmem:[#allocation5 + $0x174] sm:$0xf]
    %v276 = vld [vmem:[#allocation5 + $0x178] sm:$0xf]
    %v277 = vld [vmem:[#allocation5 + $0x17c] sm:$0xf]
    %v278 = vld [vmem:[#allocation5 + $0x180] sm:$0xf]
    %v279 = vld [vmem:[#allocation5 + $0x184] sm:$0xf]
    %v280 = vld [vmem:[#allocation5 + $0x188] sm:$0xf]
    %v281 = vld [vmem:[#allocation5 + $0x18c] sm:$0xf]
    %v282 = vld [vmem:[#allocation5 + $0x190] sm:$0xf]
    %v283 = vld [vmem:[#allocation5 + $0x194] sm:$0xf]
    %v284 = vld [vmem:[#allocation5 + $0x198] sm:$0xf]
    %v285 = vld [vmem:[#allocation5 + $0x19c] sm:$0xf]
    %v286 = vld [vmem:[#allocation5 + $0x1a0] sm:$0xf]
    %v287 = vld [vmem:[#allocation5 + $0x1a4] sm:$0xf]
    %v288 = vld [vmem:[#allocation5 + $0x1a8] sm:$0xf]
    %v289 = vld [vmem:[#allocation5 + $0x1ac] sm:$0xf]
    %v290 = vld [vmem:[#allocation5 + $0x1b0] sm:$0xf]
    %v291 = vld [vmem:[#allocation5 + $0x1b4] sm:$0xf]
    %v292 = vld [vmem:[#allocation5 + $0x1b8] sm:$0xf]
    %v293 = vld [vmem:[#allocation5 + $0x1bc] sm:$0xf]
    %v294 = vld [vmem:[#allocation5 + $0x1c0] sm:$0xf]
    %v295 = vld [vmem:[#allocation5 + $0x1c4] sm:$0xf]
    %v296 = vld [vmem:[#allocation5 + $0x1c8] sm:$0xf]
    %v297 = vld [vmem:[#allocation5 + $0x1cc] sm:$0xf]
    %v298 = vld [vmem:[#allocation5 + $0x1d0] sm:$0xf]
    %v299 = vld [vmem:[#allocation5 + $0x1d4] sm:$0xf]
    %v300 = vld [vmem:[#allocation5 + $0x1d8] sm:$0xf]
    %v301 = vld [vmem:[#allocation5 + $0x1dc] sm:$0xf]
    %v302 = vld [vmem:[#allocation5 + $0x1e0] sm:$0xf]
    %v303 = vld [vmem:[#allocation5 + $0x1e4] sm:$0xf]
    %v304 = vld [vmem:[#allocation5 + $0x1e8] sm:$0xf]
    %v305 = vld [vmem:[#allocation5 + $0x1ec] sm:$0xf]
    %v306 = vld [vmem:[#allocation5 + $0x1f0] sm:$0xf]
    %v307 = vld [vmem:[#allocation5 + $0x1f4] sm:$0xf]
    %v308 = vld [vmem:[#allocation5 + $0x1f8] sm:$0xf]
    %v309 = vld [vmem:[#allocation5 + $0x1fc] sm:$0xf]
    %v310 = vlaneseq
    %v311 = vshrl.u32 %v310, 7
    %v312 = vsub.s32 0, %v311
    %v313 = vrot.slane %v77, %v312
    %v442 = vunpack.c.l.b16 %v182
    %v443 = vunpack.c.l.b16 %v183
    %v444 = vunpack.c.l.b16 %v184
    %v445 = vunpack.c.l.b16 %v185
    %v446 = vunpack.c.l.b16 %v186
    %v447 = vunpack.c.l.b16 %v187
    %v448 = vunpack.c.l.b16 %v188
    %v449 = vunpack.c.l.b16 %v189
    %v450 = vunpack.c.l.b16 %v190
    %v451 = vunpack.c.l.b16 %v191
    %v452 = vunpack.c.l.b16 %v192
    %v453 = vunpack.c.l.b16 %v193
    %v454 = vunpack.c.l.b16 %v194
    %v455 = vunpack.c.l.b16 %v195
    %v456 = vunpack.c.l.b16 %v196
    %v457 = vunpack.c.l.b16 %v197
    %v458 = vunpack.c.l.b16 %v198
    %v459 = vunpack.c.l.b16 %v199
    %v460 = vunpack.c.l.b16 %v200
    %v461 = vunpack.c.l.b16 %v201
    %v462 = vunpack.c.l.b16 %v202
    %v463 = vunpack.c.l.b16 %v203
    %v464 = vunpack.c.l.b16 %v204
    %v465 = vunpack.c.l.b16 %v205
    %v466 = vunpack.c.l.b16 %v206
    %v467 = vunpack.c.l.b16 %v207
    %v468 = vunpack.c.l.b16 %v208
    %v469 = vunpack.c.l.b16 %v209
    %v470 = vunpack.c.l.b16 %v210
    %v471 = vunpack.c.l.b16 %v211
    %v472 = vunpack.c.l.b16 %v212
    %v473 = vunpack.c.l.b16 %v213
    %v474 = vunpack.c.l.b16 %v214
    %v475 = vunpack.c.l.b16 %v215
    %v476 = vunpack.c.l.b16 %v216
    %v477 = vunpack.c.l.b16 %v217
    %v478 = vunpack.c.l.b16 %v218
    %v479 = vunpack.c.l.b16 %v219
    %v480 = vunpack.c.l.b16 %v220
    %v481 = vunpack.c.l.b16 %v221
    %v482 = vunpack.c.l.b16 %v222
    %v483 = vunpack.c.l.b16 %v223
    %v484 = vunpack.c.l.b16 %v224
    %v485 = vunpack.c.l.b16 %v225
    %v486 = vunpack.c.l.b16 %v226
    %v487 = vunpack.c.l.b16 %v227
    %v488 = vunpack.c.l.b16 %v228
    %v489 = vunpack.c.l.b16 %v229
    %v490 = vunpack.c.l.b16 %v230
    %v491 = vunpack.c.l.b16 %v231
    %v492 = vunpack.c.l.b16 %v232
    %v493 = vunpack.c.l.b16 %v233
    %v494 = vunpack.c.l.b16 %v234
    %v495 = vunpack.c.l.b16 %v235
    %v496 = vunpack.c.l.b16 %v236
    %v497 = vunpack.c.l.b16 %v237
    %v498 = vunpack.c.l.b16 %v238
    %v499 = vunpack.c.l.b16 %v239
    %v500 = vunpack.c.l.b16 %v240
    %v501 = vunpack.c.l.b16 %v241
    %v502 = vunpack.c.l.b16 %v242
    %v503 = vunpack.c.l.b16 %v243
    %v504 = vunpack.c.l.b16 %v244
    %v505 = vunpack.c.l.b16 %v245
    %v506 = vunpack.c.l.b16 %v246
    %v507 = vunpack.c.l.b16 %v247
    %v508 = vunpack.c.l.b16 %v248
    %v509 = vunpack.c.l.b16 %v249
    %v510 = vunpack.c.l.b16 %v250
    %v511 = vunpack.c.l.b16 %v251
    %v512 = vunpack.c.l.b16 %v252
    %v513 = vunpack.c.l.b16 %v253
    %v514 = vunpack.c.l.b16 %v254
    %v515 = vunpack.c.l.b16 %v255
    %v516 = vunpack.c.l.b16 %v256
    %v517 = vunpack.c.l.b16 %v257
    %v518 = vunpack.c.l.b16 %v258
    %v519 = vunpack.c.l.b16 %v259
    %v520 = vunpack.c.l.b16 %v260
    %v521 = vunpack.c.l.b16 %v261
    %v522 = vunpack.c.l.b16 %v262
    %v523 = vunpack.c.l.b16 %v263
    %v524 = vunpack.c.l.b16 %v264
    %v525 = vunpack.c.l.b16 %v265
    %v526 = vunpack.c.l.b16 %v266
    %v527 = vunpack.c.l.b16 %v267
    %v528 = vunpack.c.l.b16 %v268
    %v529 = vunpack.c.l.b16 %v269
    %v530 = vunpack.c.l.b16 %v270
    %v531 = vunpack.c.l.b16 %v271
    %v532 = vunpack.c.l.b16 %v272
    %v533 = vunpack.c.l.b16 %v273
    %v534 = vunpack.c.l.b16 %v274
    %v535 = vunpack.c.l.b16 %v275
    %v536 = vunpack.c.l.b16 %v276
    %v537 = vunpack.c.l.b16 %v277
    %v538 = vunpack.c.l.b16 %v278
    %v539 = vunpack.c.l.b16 %v279
    %v540 = vunpack.c.l.b16 %v280
    %v541 = vunpack.c.l.b16 %v281
    %v542 = vunpack.c.l.b16 %v282
    %v543 = vunpack.c.l.b16 %v283
    %v544 = vunpack.c.l.b16 %v284
    %v545 = vunpack.c.l.b16 %v285
    %v546 = vunpack.c.l.b16 %v286
    %v547 = vunpack.c.l.b16 %v287
    %v548 = vunpack.c.l.b16 %v288
    %v549 = vunpack.c.l.b16 %v289
    %v550 = vunpack.c.l.b16 %v290
    %v551 = vunpack.c.l.b16 %v291
    %v552 = vunpack.c.l.b16 %v292
    %v553 = vunpack.c.l.b16 %v293
    %v554 = vunpack.c.l.b16 %v294
    %v555 = vunpack.c.l.b16 %v295
    %v556 = vunpack.c.l.b16 %v296
    %v557 = vunpack.c.l.b16 %v297
    %v558 = vunpack.c.l.b16 %v298
    %v559 = vunpack.c.l.b16 %v299
    %v560 = vunpack.c.l.b16 %v300
    %v561 = vunpack.c.l.b16 %v301
    %v562 = vunpack.c.l.b16 %v302
    %v563 = vunpack.c.l.b16 %v303
    %v564 = vunpack.c.l.b16 %v304
    %v565 = vunpack.c.l.b16 %v305
    %v566 = vunpack.c.l.b16 %v306
    %v567 = vunpack.c.l.b16 %v307
    %v568 = vunpack.c.l.b16 %v308
    %v569 = vunpack.c.l.b16 %v309
    %v570 = vpack.c.b16 %v443, %v442
    %v571 = vpack.c.b16 %v445, %v444
    %v572 = vpack.c.b16 %v447, %v446
    %v573 = vpack.c.b16 %v449, %v448
    %v574 = vpack.c.b16 %v451, %v450
    %v575 = vpack.c.b16 %v453, %v452
    %v576 = vpack.c.b16 %v455, %v454
    %v577 = vpack.c.b16 %v457, %v456
    %v578 = vpack.c.b16 %v459, %v458
    %v579 = vpack.c.b16 %v461, %v460
    %v580 = vpack.c.b16 %v463, %v462
    %v581 = vpack.c.b16 %v465, %v464
    %v582 = vpack.c.b16 %v467, %v466
    %v583 = vpack.c.b16 %v469, %v468
    %v584 = vpack.c.b16 %v471, %v470
    %v585 = vpack.c.b16 %v473, %v472
    %v586 = vpack.c.b16 %v475, %v474
    %v587 = vpack.c.b16 %v477, %v476
    %v588 = vpack.c.b16 %v479, %v478
    %v589 = vpack.c.b16 %v481, %v480
    %v590 = vpack.c.b16 %v483, %v482
    %v591 = vpack.c.b16 %v485, %v484
    %v592 = vpack.c.b16 %v487, %v486
    %v593 = vpack.c.b16 %v489, %v488
    %v594 = vpack.c.b16 %v491, %v490
    %v595 = vpack.c.b16 %v493, %v492
    %v596 = vpack.c.b16 %v495, %v494
    %v597 = vpack.c.b16 %v497, %v496
    %v598 = vpack.c.b16 %v499, %v498
    %v599 = vpack.c.b16 %v501, %v500
    %v600 = vpack.c.b16 %v503, %v502
    %v601 = vpack.c.b16 %v505, %v504
    %v602 = vpack.c.b16 %v507, %v506
    %v603 = vpack.c.b16 %v509, %v508
    %v604 = vpack.c.b16 %v511, %v510
    %v605 = vpack.c.b16 %v513, %v512
    %v606 = vpack.c.b16 %v515, %v514
    %v607 = vpack.c.b16 %v517, %v516
    %v608 = vpack.c.b16 %v519, %v518
    %v609 = vpack.c.b16 %v521, %v520
    %v610 = vpack.c.b16 %v523, %v522
    %v611 = vpack.c.b16 %v525, %v524
    %v612 = vpack.c.b16 %v527, %v526
    %v613 = vpack.c.b16 %v529, %v528
    %v614 = vpack.c.b16 %v531, %v530
    %v615 = vpack.c.b16 %v533, %v532
    %v616 = vpack.c.b16 %v535, %v534
    %v617 = vpack.c.b16 %v537, %v536
    %v618 = vpack.c.b16 %v539, %v538
    %v619 = vpack.c.b16 %v541, %v540
    %v620 = vpack.c.b16 %v543, %v542
    %v621 = vpack.c.b16 %v545, %v544
    %v622 = vpack.c.b16 %v547, %v546
    %v623 = vpack.c.b16 %v549, %v548
    %v624 = vpack.c.b16 %v551, %v550
    %v625 = vpack.c.b16 %v553, %v552
    %v626 = vpack.c.b16 %v555, %v554
    %v627 = vpack.c.b16 %v557, %v556
    %v628 = vpack.c.b16 %v559, %v558
    %v629 = vpack.c.b16 %v561, %v560
    %v630 = vpack.c.b16 %v563, %v562
    %v631 = vpack.c.b16 %v565, %v564
    %v632 = vpack.c.b16 %v567, %v566
    %v633 = vpack.c.b16 %v569, %v568
    %698 = vmatprep.subr.bf16.mxu0 0
    %699 = vmatpush1.bf16.msra.mxu0 %v570
    %700 = vmatprep.subr.bf16.mxu0 0
    %701 = vmatpush1.bf16.msra.mxu0 %v571
    %702 = vmatprep.subr.bf16.mxu0 0
    %703 = vmatpush1.bf16.msra.mxu0 %v572
    %704 = vmatprep.subr.bf16.mxu0 0
    %705 = vmatpush1.bf16.msra.mxu0 %v573
    %706 = vmatprep.subr.bf16.mxu0 0
    %707 = vmatpush1.bf16.msra.mxu0 %v574
    %708 = vmatprep.subr.bf16.mxu0 0
    %709 = vmatpush1.bf16.msra.mxu0 %v575
    %710 = vmatprep.subr.bf16.mxu0 0
    %711 = vmatpush1.bf16.msra.mxu0 %v576
    %712 = vmatprep.subr.bf16.mxu0 0
    %713 = vmatpush1.bf16.msra.mxu0 %v577
    %714 = vmatprep.subr.bf16.mxu0 0
    %715 = vmatpush1.bf16.msra.mxu0 %v578
    %716 = vmatprep.subr.bf16.mxu0 0
    %717 = vmatpush1.bf16.msra.mxu0 %v579
    %718 = vmatprep.subr.bf16.mxu0 0
    %719 = vmatpush1.bf16.msra.mxu0 %v580
    %720 = vmatprep.subr.bf16.mxu0 0
    %721 = vmatpush1.bf16.msra.mxu0 %v581
    %722 = vmatprep.subr.bf16.mxu0 0
    %723 = vmatpush1.bf16.msra.mxu0 %v582
    %724 = vmatprep.subr.bf16.mxu0 0
    %725 = vmatpush1.bf16.msra.mxu0 %v583
    %726 = vmatprep.subr.bf16.mxu0 0
    %727 = vmatpush1.bf16.msra.mxu0 %v584
    %728 = vmatprep.subr.bf16.mxu0 0
    %729 = vmatpush1.bf16.msra.mxu0 %v585
    %730 = vmatprep.mubr.bf16.mxu0 %v175
    %731 = vmatmul.mubr.bf16.gmra.mrb[0].mxu0 %v174
    %v732 = vpop.f32.mrb[0].mxu0
    %v733 = vadd.f32 %v313, %v732
    %v734 = vpop.f32.mrb[0].mxu0
    %v735 = vpop.f32.mrb[0].mxu0
    %v736 = vpop.f32.mrb[0].mxu0
    %737 = vdwg.mxu0
    %738 = vmatprep.subr.bf16.mxu0 0
    %739 = vmatpush1.bf16.msra.mxu0 %v586
    %740 = vmatprep.subr.bf16.mxu0 0
    %741 = vmatpush1.bf16.msra.mxu0 %v587
    %742 = vmatprep.subr.bf16.mxu0 0
    %743 = vmatpush1.bf16.msra.mxu0 %v588
    %744 = vmatprep.subr.bf16.mxu0 0
    %745 = vmatpush1.bf16.msra.mxu0 %v589
    %746 = vmatprep.subr.bf16.mxu0 0
    %747 = vmatpush1.bf16.msra.mxu0 %v590
    %748 = vmatprep.subr.bf16.mxu0 0
    %749 = vmatpush1.bf16.msra.mxu0 %v591
    %750 = vmatprep.subr.bf16.mxu0 0
    %751 = vmatpush1.bf16.msra.mxu0 %v592
    %752 = vmatprep.subr.bf16.mxu0 0
    %753 = vmatpush1.bf16.msra.mxu0 %v593
    %754 = vmatprep.subr.bf16.mxu0 0
    %755 = vmatpush1.bf16.msra.mxu0 %v594
    %756 = vmatprep.subr.bf16.mxu0 0
    %757 = vmatpush1.bf16.msra.mxu0 %v595
    %758 = vmatprep.subr.bf16.mxu0 0
    %759 = vmatpush1.bf16.msra.mxu0 %v596
    %760 = vmatprep.subr.bf16.mxu0 0
    %761 = vmatpush1.bf16.msra.mxu0 %v597
    %762 = vmatprep.subr.bf16.mxu0 0
    %763 = vmatpush1.bf16.msra.mxu0 %v598
    %764 = vmatprep.subr.bf16.mxu0 0
    %765 = vmatpush1.bf16.msra.mxu0 %v599
    %766 = vmatprep.subr.bf16.mxu0 0
    %767 = vmatpush1.bf16.msra.mxu0 %v600
    %768 = vmatprep.subr.bf16.mxu0 0
    %769 = vmatpush1.bf16.msra.mxu0 %v601
    %770 = vmatprep.mubr.bf16.mxu0 %v177
    %771 = vmatmul.mubr.bf16.gmra.mrb[0].mxu0 %v176
    %v772 = vpop.f32.mrb[0].mxu0
    %v773 = vadd.f32 %v733, %v772
    %v774 = vpop.f32.mrb[0].mxu0
    %v775 = vpop.f32.mrb[0].mxu0
    %v776 = vpop.f32.mrb[0].mxu0
    %777 = vdwg.mxu0
    %778 = vmatprep.subr.bf16.mxu0 0
    %779 = vmatpush1.bf16.msra.mxu0 %v602
    %780 = vmatprep.subr.bf16.mxu0 0
    %781 = vmatpush1.bf16.msra.mxu0 %v603
    %782 = vmatprep.subr.bf16.mxu0 0
    %783 = vmatpush1.bf16.msra.mxu0 %v604
    %784 = vmatprep.subr.bf16.mxu0 0
    %785 = vmatpush1.bf16.msra.mxu0 %v605
    %786 = vmatprep.subr.bf16.mxu0 0
    %787 = vmatpush1.bf16.msra.mxu0 %v606
    %788 = vmatprep.subr.bf16.mxu0 0
    %789 = vmatpush1.bf16.msra.mxu0 %v607
    %790 = vmatprep.subr.bf16.mxu0 0
    %791 = vmatpush1.bf16.msra.mxu0 %v608
    %792 = vmatprep.subr.bf16.mxu0 0
    %793 = vmatpush1.bf16.msra.mxu0 %v609
    %794 = vmatprep.subr.bf16.mxu0 0
    %795 = vmatpush1.bf16.msra.mxu0 %v610
    %796 = vmatprep.subr.bf16.mxu0 0
    %797 = vmatpush1.bf16.msra.mxu0 %v611
    %798 = vmatprep.subr.bf16.mxu0 0
    %799 = vmatpush1.bf16.msra.mxu0 %v612
    %800 = vmatprep.subr.bf16.mxu0 0
    %801 = vmatpush1.bf16.msra.mxu0 %v613
    %802 = vmatprep.subr.bf16.mxu0 0
    %803 = vmatpush1.bf16.msra.mxu0 %v614
    %804 = vmatprep.subr.bf16.mxu0 0
    %805 = vmatpush1.bf16.msra.mxu0 %v615
    %806 = vmatprep.subr.bf16.mxu0 0
    %807 = vmatpush1.bf16.msra.mxu0 %v616
    %808 = vmatprep.subr.bf16.mxu0 0
    %809 = vmatpush1.bf16.msra.mxu0 %v617
    %810 = vmatprep.mubr.bf16.mxu0 %v179
    %811 = vmatmul.mubr.bf16.gmra.mrb[0].mxu0 %v178
    %v812 = vpop.f32.mrb[0].mxu0
    %v813 = vadd.f32 %v773, %v812
    %v814 = vpop.f32.mrb[0].mxu0
    %v815 = vpop.f32.mrb[0].mxu0
    %v816 = vpop.f32.mrb[0].mxu0
    %817 = vdwg.mxu0
    %818 = vmatprep.subr.bf16.mxu0 0
    %819 = vmatpush1.bf16.msra.mxu0 %v618
    %820 = vmatprep.subr.bf16.mxu0 0
    %821 = vmatpush1.bf16.msra.mxu0 %v619
    %822 = vmatprep.subr.bf16.mxu0 0
    %823 = vmatpush1.bf16.msra.mxu0 %v620
    %824 = vmatprep.subr.bf16.mxu0 0
    %825 = vmatpush1.bf16.msra.mxu0 %v621
    %826 = vmatprep.subr.bf16.mxu0 0
    %827 = vmatpush1.bf16.msra.mxu0 %v622
    %828 = vmatprep.subr.bf16.mxu0 0
    %829 = vmatpush1.bf16.msra.mxu0 %v623
    %830 = vmatprep.subr.bf16.mxu0 0
    %831 = vmatpush1.bf16.msra.mxu0 %v624
    %832 = vmatprep.subr.bf16.mxu0 0
    %833 = vmatpush1.bf16.msra.mxu0 %v625
    %834 = vmatprep.subr.bf16.mxu0 0
    %835 = vmatpush1.bf16.msra.mxu0 %v626
    %836 = vmatprep.subr.bf16.mxu0 0
    %837 = vmatpush1.bf16.msra.mxu0 %v627
    %838 = vmatprep.subr.bf16.mxu0 0
    %839 = vmatpush1.bf16.msra.mxu0 %v628
    %840 = vmatprep.subr.bf16.mxu0 0
    %841 = vmatpush1.bf16.msra.mxu0 %v629
    %842 = vmatprep.subr.bf16.mxu0 0
    %843 = vmatpush1.bf16.msra.mxu0 %v630
    %844 = vmatprep.subr.bf16.mxu0 0
    %845 = vmatpush1.bf16.msra.mxu0 %v631
    %846 = vmatprep.subr.bf16.mxu0 0
    %847 = vmatpush1.bf16.msra.mxu0 %v632
    %848 = vmatprep.subr.bf16.mxu0 0
    %849 = vmatpush1.bf16.msra.mxu0 %v633
    %850 = vmatprep.mubr.bf16.mxu0 %v181
    %851 = vmatmul.mubr.bf16.gmra.mrb[0].mxu0 %v180
    %v852 = vpop.f32.mrb[0].mxu0
    %v853 = vadd.f32 %v813, %v852
    %v854 = vpop.f32.mrb[0].mxu0
    %v855 = vpop.f32.mrb[0].mxu0
    %v856 = vpop.f32.mrb[0].mxu0
    %857 = vdwg.mxu0
    %v858 = vmax.f32 %v853, 0.0
    %v859 = vpack.c.bf16 %v858, %v858
    %v860 = vld [vmem:[#allocation7] sm:$0xf]
    %v861 = vld [vmem:[#allocation7 + $0x4] sm:$0xf]
    %v862 = vld [vmem:[#allocation7 + $0x8] sm:$0xf]
    %v863 = vld [vmem:[#allocation7 + $0xc] sm:$0xf]
    %v864 = vld [vmem:[#allocation7 + $0x10] sm:$0xf]
    %v865 = vld [vmem:[#allocation7 + $0x14] sm:$0xf]
    %v866 = vld [vmem:[#allocation7 + $0x18] sm:$0xf]
    %v867 = vld [vmem:[#allocation7 + $0x1c] sm:$0xf]
    %v868 = vld [vmem:[#allocation7 + $0x20] sm:$0xf]
    %v869 = vld [vmem:[#allocation7 + $0x24] sm:$0xf]
    %v870 = vld [vmem:[#allocation7 + $0x28] sm:$0xf]
    %v871 = vld [vmem:[#allocation7 + $0x2c] sm:$0xf]
    %v872 = vld [vmem:[#allocation7 + $0x30] sm:$0xf]
    %v873 = vld [vmem:[#allocation7 + $0x34] sm:$0xf]
    %v874 = vld [vmem:[#allocation7 + $0x38] sm:$0xf]
    %v875 = vld [vmem:[#allocation7 + $0x3c] sm:$0xf]
    %v876 = vlaneseq
    %v877 = vshrl.u32 %v876, 7
    %v878 = vsub.s32 1, %v877
    %v879 = vrot.slane %v77, %v878
    %v896 = vunpack.c.l.b16 %v860
    %v897 = vunpack.c.l.b16 %v861
    %v898 = vunpack.c.l.b16 %v862
    %v899 = vunpack.c.l.b16 %v863
    %v900 = vunpack.c.l.b16 %v864
    %v901 = vunpack.c.l.b16 %v865
    %v902 = vunpack.c.l.b16 %v866
    %v903 = vunpack.c.l.b16 %v867
    %v904 = vunpack.c.l.b16 %v868
    %v905 = vunpack.c.l.b16 %v869
    %v906 = vunpack.c.l.b16 %v870
    %v907 = vunpack.c.l.b16 %v871
    %v908 = vunpack.c.l.b16 %v872
    %v909 = vunpack.c.l.b16 %v873
    %v910 = vunpack.c.l.b16 %v874
    %v911 = vunpack.c.l.b16 %v875
    %v912 = vpack.c.b16 %v897, %v896
    %v913 = vpack.c.b16 %v899, %v898
    %v914 = vpack.c.b16 %v901, %v900
    %v915 = vpack.c.b16 %v903, %v902
    %v916 = vpack.c.b16 %v905, %v904
    %v917 = vpack.c.b16 %v907, %v906
    %v918 = vpack.c.b16 %v909, %v908
    %v919 = vpack.c.b16 %v911, %v910
    %928 = vmatprep.subr.bf16.mxu0 0
    %929 = vmatpush1.bf16.msra.mxu0 %v912
    %930 = vmatprep.subr.bf16.mxu0 0
    %931 = vmatpush1.bf16.msra.mxu0 %v913
    %932 = vmatprep.subr.bf16.mxu0 0
    %933 = vmatpush1.bf16.msra.mxu0 %v914
    %934 = vmatprep.subr.bf16.mxu0 0
    %935 = vmatpush1.bf16.msra.mxu0 %v915
    %936 = vmatprep.subr.bf16.mxu0 0
    %937 = vmatpush1.bf16.msra.mxu0 %v916
    %938 = vmatprep.subr.bf16.mxu0 0
    %939 = vmatpush1.bf16.msra.mxu0 %v917
    %940 = vmatprep.subr.bf16.mxu0 0
    %941 = vmatpush1.bf16.msra.mxu0 %v918
    %942 = vmatprep.subr.bf16.mxu0 0
    %943 = vmatpush1.bf16.msra.mxu0 %v919
    %944 = vmatprep.subr.bf16.mxu0 0
    %945 = vmatpush1.bf16.msra.mxu0 0
    %946 = vmatprep.subr.bf16.mxu0 0
    %947 = vmatpush1.bf16.msra.mxu0 0
    %948 = vmatprep.subr.bf16.mxu0 0
    %949 = vmatpush1.bf16.msra.mxu0 0
    %950 = vmatprep.subr.bf16.mxu0 0
    %951 = vmatpush1.bf16.msra.mxu0 0
    %952 = vmatprep.subr.bf16.mxu0 0
    %953 = vmatpush1.bf16.msra.mxu0 0
    %954 = vmatprep.subr.bf16.mxu0 0
    %955 = vmatpush1.bf16.msra.mxu0 0
    %956 = vmatprep.subr.bf16.mxu0 0
    %957 = vmatpush1.bf16.msra.mxu0 0
    %958 = vmatprep.subr.bf16.mxu0 0
    %959 = vmatpush1.bf16.msra.mxu0 0
    %960 = vmatprep.mubr.bf16.mxu0 0
    %961 = vmatmul.mubr.bf16.gmra.mrb[0].mxu0 %v859
    %v962 = vpop.f32.mrb[0].mxu0
    %v963 = vadd.f32 %v879, %v962
    %v964 = vpop.f32.mrb[0].mxu0
    %v965 = vpop.f32.mrb[0].mxu0
    %v966 = vpop.f32.mrb[0].mxu0
    %967 = vdwg.mxu0
    %968 = vadd.xlane.f32.xlu0 %v963
    %v969 = vpop.xlane.xlu0 %968
    %v970 = vmul.f32 %v969, 0.03125
    %v971 = vmul.f32 %v963, %v963
    %972 = vadd.xlane.f32.xlu0 %v971
    %v973 = vpop.xlane.xlu0 %972
    %v974 = vmul.f32 %v973, 0.03125
    %v975 = vmul.f32 %v970, %v970
    %v976 = vsub.f32 %v974, %v975
    %v977 = vmax.f32 %v976, 0.0
    %v978 = vsub.f32 %v963, %v970
    %v979 = vadd.f32 %v977, 1e-05
    %v980 = vrsqrt.pop %v979
    %v981 = vmul.f32 %v978, %v980
    %v982 = vlaneseq
    %v983 = vshrl.u32 %v982, 7
    %v984 = vsub.s32 3, %v983
    %v985 = vrot.slane %v77, %v984
    %v986 = vmul.f32 %v981, %v985
    %v987 = vlaneseq
    %v988 = vshrl.u32 %v987, 7
    %v989 = vsub.s32 4, %v988
    %v990 = vrot.slane %v77, %v989
    %v991 = vadd.f32 %v986, %v990
    %v992 = vmax.f32 %v991, 0.0
    %v993 = vpack.c.bf16 %v992, %v992
    %v994 = vld [vmem:[#allocation8] sm:$0xf]
    %v995 = vld [vmem:[#allocation8 + $0x4] sm:$0xf]
    %v996 = vld [vmem:[#allocation8 + $0x8] sm:$0xf]
    %v997 = vld [vmem:[#allocation8 + $0xc] sm:$0xf]
    %v998 = vld [vmem:[#allocation8 + $0x10] sm:$0xf]
    %v999 = vld [vmem:[#allocation8 + $0x14] sm:$0xf]
    %v1000 = vld [vmem:[#allocation8 + $0x18] sm:$0xf]
    %v1001 = vld [vmem:[#allocation8 + $0x1c] sm:$0xf]
    %v1002 = vld [vmem:[#allocation8 + $0x20] sm:$0xf]
    %v1003 = vld [vmem:[#allocation8 + $0x24] sm:$0xf]
    %v1004 = vld [vmem:[#allocation8 + $0x28] sm:$0xf]
    %v1005 = vld [vmem:[#allocation8 + $0x2c] sm:$0xf]
    %v1006 = vld [vmem:[#allocation8 + $0x30] sm:$0xf]
    %v1007 = vld [vmem:[#allocation8 + $0x34] sm:$0xf]
    %v1008 = vld [vmem:[#allocation8 + $0x38] sm:$0xf]
    %v1009 = vld [vmem:[#allocation8 + $0x3c] sm:$0xf]
    %v1010 = vlaneseq
    %v1011 = vshrl.u32 %v1010, 7
    %v1012 = vsub.s32 2, %v1011
    %v1013 = vrot.slane %v77, %v1012
    %v1030 = vunpack.c.l.b16 %v994
    %v1031 = vunpack.c.l.b16 %v995
    %v1032 = vunpack.c.l.b16 %v996
    %v1033 = vunpack.c.l.b16 %v997
    %v1034 = vunpack.c.l.b16 %v998
    %v1035 = vunpack.c.l.b16 %v999
    %v1036 = vunpack.c.l.b16 %v1000
    %v1037 = vunpack.c.l.b16 %v1001
    %v1038 = vunpack.c.l.b16 %v1002
    %v1039 = vunpack.c.l.b16 %v1003
    %v1040 = vunpack.c.l.b16 %v1004
    %v1041 = vunpack.c.l.b16 %v1005
    %v1042 = vunpack.c.l.b16 %v1006
    %v1043 = vunpack.c.l.b16 %v1007
    %v1044 = vunpack.c.l.b16 %v1008
    %v1045 = vunpack.c.l.b16 %v1009
    %v1046 = vpack.c.b16 %v1031, %v1030
    %v1047 = vpack.c.b16 %v1033, %v1032
    %v1048 = vpack.c.b16 %v1035, %v1034
    %v1049 = vpack.c.b16 %v1037, %v1036
    %v1050 = vpack.c.b16 %v1039, %v1038
    %v1051 = vpack.c.b16 %v1041, %v1040
    %v1052 = vpack.c.b16 %v1043, %v1042
    %v1053 = vpack.c.b16 %v1045, %v1044
    %1062 = vmatprep.subr.bf16.mxu0 0
    %1063 = vmatpush1.bf16.msra.mxu0 %v1046
    %1064 = vmatprep.subr.bf16.mxu0 0
    %1065 = vmatpush1.bf16.msra.mxu0 %v1047
    %1066 = vmatprep.subr.bf16.mxu0 0
    %1067 = vmatpush1.bf16.msra.mxu0 %v1048
    %1068 = vmatprep.subr.bf16.mxu0 0
    %1069 = vmatpush1.bf16.msra.mxu0 %v1049
    %1070 = vmatprep.subr.bf16.mxu0 0
    %1071 = vmatpush1.bf16.msra.mxu0 %v1050
    %1072 = vmatprep.subr.bf16.mxu0 0
    %1073 = vmatpush1.bf16.msra.mxu0 %v1051
    %1074 = vmatprep.subr.bf16.mxu0 0
    %1075 = vmatpush1.bf16.msra.mxu0 %v1052
    %1076 = vmatprep.subr.bf16.mxu0 0
    %1077 = vmatpush1.bf16.msra.mxu0 %v1053
    %1078 = vmatprep.subr.bf16.mxu0 0
    %1079 = vmatpush1.bf16.msra.mxu0 0
    %1080 = vmatprep.subr.bf16.mxu0 0
    %1081 = vmatpush1.bf16.msra.mxu0 0
    %1082 = vmatprep.subr.bf16.mxu0 0
    %1083 = vmatpush1.bf16.msra.mxu0 0
    %1084 = vmatprep.subr.bf16.mxu0 0
    %1085 = vmatpush1.bf16.msra.mxu0 0
    %1086 = vmatprep.subr.bf16.mxu0 0
    %1087 = vmatpush1.bf16.msra.mxu0 0
    %1088 = vmatprep.subr.bf16.mxu0 0
    %1089 = vmatpush1.bf16.msra.mxu0 0
    %1090 = vmatprep.subr.bf16.mxu0 0
    %1091 = vmatpush1.bf16.msra.mxu0 0
    %1092 = vmatprep.subr.bf16.mxu0 0
    %1093 = vmatpush1.bf16.msra.mxu0 0
    %1094 = vmatprep.mubr.bf16.mxu0 0
    %1095 = vmatmul.mubr.bf16.gmra.mrb[0].mxu0 %v993
    %v1096 = vpop.f32.mrb[0].mxu0
    %v1097 = vadd.f32 %v1013, %v1096
    %v1098 = vpop.f32.mrb[0].mxu0
    %v1099 = vpop.f32.mrb[0].mxu0
    %v1100 = vpop.f32.mrb[0].mxu0
    %1101 = vdwg.mxu0
    %v1102 = vxor.u32 %v1097, 2147483648
    %v1103 = vmul.f32 %v1102, 1.442695
    %v1104 = vpow.pop %v1103
    %v1105 = vadd.f32 %v1104, 1.0
    %v1106 = vrcp.pop %v1105
    %v1107 = vmul.f32 1.0, %v1106
    %1108 = vst [vmem:[#allocation10] sm:$0xff] %v1107
    // Predicated region
    $region38: #{tpu_custom_call.1} parent=1 // pred_check
      _
    $region39: #{tpu_custom_call.1} parent=1 // pred_check_branch
      %1110 = sbr.rel (0) target = $region41
    $region40: #{tpu_custom_call.1} parent=1 // pred_region
      %s1112 = ssub.s32 128, 32
      %1113 = vsyncadd [#allocation4], %s1112
      %s1114 = sshll.u32 [#allocation10], 4
      %s1115 = int_to_ptr.vmem [resolvable:$true] %s1114
      %1120 = dma.vmem_to_hbm [thread:$0]  %s1115, 32, %s5, [#allocation4], 32, 32, 2
    $region41: #{tpu_custom_call.1} parent=1 // pred_fallthru
      _
    // Predicated region
    $region42: #{tpu_custom_call.1} parent=1 // pred_check
      _
    $region43: #{tpu_custom_call.1} parent=1 // pred_check_branch
      %1122 = sbr.rel (0) target = $region45
    $region44: #{tpu_custom_call.1} parent=1 // pred_region
      %1123 = dma.done [#allocation4], 128
    $region45: #{tpu_custom_call.1} parent=1 // pred_fallthru
      _
    %1124 = vsyncpa [#allocation3], 1
    %1125 = vsyncpa [#allocation6], 1
    %1126 = vsyncpa [#allocation9], 1
    %1127 = vsyncpa [#allocation4], 1

</llo_original>
